<compile_context>
chip_gen: v5e
topology: v5e:2x2
jax: 0.10.0
libtpu: 0.0.40
codegen_flags: <defaults>
</compile_context>

<pallas_src>
import functools

import jax
import jax.numpy as jnp
from jax.experimental import pallas as pl
from jax.experimental.pallas import tpu as pltpu

MINUTE_SIZE = 289
WEEKDAY_SIZE = 8
VOCAB = MINUTE_SIZE + WEEKDAY_SIZE  # 297


def _round_up(x, m):
    return ((x + m - 1) // m) * m


def _cdiv(a, b):
    return (a + b - 1) // b


def _time_period_emb_kernel(day_ref, week_ref, tbl_ref, out_ref, *, pack, v_pad):
    """One grid step: (TILE_M, pack) day/week indices -> (TILE_M, pack*emb).

    For slot g only day column g and week column g can hit the g-th
    (v_pad x pack*emb) block of the block-diagonal table, so that slot's
    one-hot is two compares + one OR over a (TILE_M, v_pad) iota.  The pack
    partial matmuls write disjoint column groups, so the f32 adds below only
    add zeros (exact).
    """
    tile_m = day_ref.shape[0]
    day = day_ref[...]                      # (TILE_M, pack) int32
    week = week_ref[...] + MINUTE_SIZE      # (TILE_M, pack) int32
    iota = jax.lax.broadcasted_iota(jnp.int32, (tile_m, v_pad), 1)

    acc = None
    for g in range(pack):                   # statically unrolled
        hit = jnp.logical_or(iota == day[:, g:g + 1], iota == week[:, g:g + 1])
        oh = hit.astype(tbl_ref.dtype)      # bf16 one-hot -> native bf16 MXU
        part = jnp.dot(oh, tbl_ref[g * v_pad:(g + 1) * v_pad, :],
                       preferred_element_type=jnp.float32)
        acc = part if acc is None else acc + part
    out_ref[...] = acc.astype(out_ref.dtype)


def build_time_period_table(day_table, week_table, *, mxu_dtype=jnp.bfloat16):
    """Build the packed block-diagonal table ONCE (hoisted out of hot path).

    Returns (big_tbl, pack, v_pad, emb_dim)."""
    assert day_table.shape[0] == MINUTE_SIZE
    assert week_table.shape[0] == WEEKDAY_SIZE
    assert day_table.shape[1] == week_table.shape[1]
    emb_dim = day_table.shape[1]

    # Pack `pack` consecutive tokens per output row so output stores are
    # 128-lane dense (when emb_dim divides 128); otherwise one token per row.
    pack = 128 // emb_dim if (emb_dim <= 128 and 128 % emb_dim == 0) else 1
    # Pad the concatenated vocab to a multiple of 128 lanes.
    v_pad = _round_up(VOCAB, 128)

    cat = jnp.concatenate([day_table, week_table], axis=0).astype(mxu_dtype)
    cat = jnp.pad(cat, ((0, v_pad - VOCAB), (0, 0)))       # (v_pad, emb_dim)
    rows = []
    for g in range(pack):
        row = [jnp.zeros((v_pad, emb_dim), mxu_dtype) for _ in range(pack)]
        row[g] = cat
        rows.append(jnp.concatenate(row, axis=1))
    big_tbl = jnp.concatenate(rows, axis=0)   # (pack*v_pad, pack*emb_dim)
    return big_tbl, pack, v_pad, emb_dim


def time_period_emb(x_day, x_week, big_tbl, pack, v_pad, emb_dim, *,
                    tile_m=256, out_dtype=jnp.float32):
    """Pallas equivalent of TimePeriodEmb.forward(x_day, x_week)."""
    assert x_day.shape == x_week.shape
    lead_shape = x_day.shape
    n = 1
    for d in lead_shape:
        n *= d

    # Adaptive tiling: <= 7 wasted rows per tile; >= 2 grid steps when there
    # is enough work so dimension_semantics=("parallel",) uses both v7x TCs.
    m_total = _cdiv(max(n, 1), pack)
    n_tiles = max(1, _cdiv(m_total, tile_m))
    if m_total >= 16:
        n_tiles = max(n_tiles, 2)
    tm = max(8, _round_up(_cdiv(m_total, n_tiles), 8))
    m_pad = n_tiles * tm
    n_pad = m_pad * pack

    day_idx = jnp.pad(x_day.astype(jnp.int32).reshape(-1),
                      (0, n_pad - n)).reshape(m_pad, pack)
    week_idx = jnp.pad(x_week.astype(jnp.int32).reshape(-1),
                       (0, n_pad - n)).reshape(m_pad, pack)

    out_w = pack * emb_dim
    cost = pl.CostEstimate(
        flops=2 * m_pad * pack * v_pad * out_w,
        transcendentals=0,
        bytes_accessed=(2 * m_pad * pack * 4
                        + big_tbl.size * big_tbl.dtype.itemsize
                        + m_pad * out_w * jnp.dtype(out_dtype).itemsize),
    )

    kernel = functools.partial(_time_period_emb_kernel, pack=pack, v_pad=v_pad)
    out = pl.pallas_call(
        kernel,
        out_shape=jax.ShapeDtypeStruct((m_pad, out_w), out_dtype),
        grid_spec=pltpu.PrefetchScalarGridSpec(
            num_scalar_prefetch=0,
            grid=(n_tiles,),
            in_specs=[
                # Day / week index streams, one row tile per grid step.
                pl.BlockSpec((tm, pack), lambda i: (i, 0)),
                pl.BlockSpec((tm, pack), lambda i: (i, 0)),
                # Small block-diagonal table: full-extent block, resident in
                # VMEM (constant index_map -> fetched once).
                pl.BlockSpec(big_tbl.shape, lambda i: (0, 0)),
            ],
            out_specs=pl.BlockSpec((tm, out_w), lambda i: (i, 0)),
        ),
        compiler_params=pltpu.CompilerParams(
            dimension_semantics=("parallel",)),
        cost_estimate=cost,
    )(day_idx, week_idx, big_tbl)

    # (m_pad, pack*E) -> (m_pad*pack, E) is a free row-major view; drop pad.
    out = out.reshape(m_pad * pack, emb_dim)[:n]
    return out.reshape(*lead_shape, emb_dim)


if __name__ == "__main__":
    key = jax.random.PRNGKey(0)
    (k_day_tbl, k_week_tbl, k_day_idx, k_week_idx,
     k_day2, k_week2) = jax.random.split(key, 6)

    B, T = 2, 8
    emb_dim = 32

    # nn.Embedding default init: N(0, 1)
    day_table = jax.random.normal(k_day_tbl, (MINUTE_SIZE, emb_dim),
                                  dtype=jnp.float32)
    week_table = jax.random.normal(k_week_tbl, (WEEKDAY_SIZE, emb_dim),
                                   dtype=jnp.float32)

    # Hoisted table construction (built once, reused across calls).
    big_tbl, pack, v_pad, e = build_time_period_table(day_table, week_table)
    big_tbl = jax.block_until_ready(big_tbl)

    x_day = jax.random.randint(k_day_idx, (B, T), 0, MINUTE_SIZE,
                               dtype=jnp.int32)
    x_week = jax.random.randint(k_week_idx, (B, T), 0, WEEKDAY_SIZE,
                                dtype=jnp.int32)

    out = jax.block_until_ready(
        time_period_emb(x_day, x_week, big_tbl, pack, v_pad, e))

    # Reference with the same bf16 table rounding (f32 accumulation is exact).
    day_bf = day_table.astype(jnp.bfloat16).astype(jnp.float32)
    week_bf = week_table.astype(jnp.bfloat16).astype(jnp.float32)
    ref = day_bf[x_day] + week_bf[x_week]
    assert out.shape == (B, T, emb_dim)
    assert out.dtype == jnp.float32
    assert jnp.allclose(out, ref, atol=1e-6, rtol=1e-6)
    # Also close to full-f32 PyTorch semantics (only bf16 table rounding).
    ref_f32 = day_table[x_day] + week_table[x_week]
    assert jnp.allclose(out, ref_f32, atol=5e-2, rtol=5e-2)

    # Larger shape: multi-step grid with a ragged (padded) tail tile.
    B2, T2 = 7, 300
    x_day2 = jax.random.randint(k_day2, (B2, T2), 0, MINUTE_SIZE,
                                dtype=jnp.int32)
    x_week2 = jax.random.randint(k_week2, (B2, T2), 0, WEEKDAY_SIZE,
                                 dtype=jnp.int32)
    out2 = jax.block_until_ready(
        time_period_emb(x_day2, x_week2, big_tbl, pack, v_pad, e))
    ref2 = day_bf[x_day2] + week_bf[x_week2]
    assert out2.shape == (B2, T2, emb_dim)
    assert jnp.allclose(out2, ref2, atol=1e-6, rtol=1e-6)

    print("KERNEL_OK")
</pallas_src>

<mosaic_0001>
module attributes {stable_mosaic.version = 11 : i64} {
  func.func @_time_period_emb_kernel(%arg0: i32, %arg1: memref<8x4xi32, #tpu.memory_space<vmem>>, %arg2: memref<8x4xi32, #tpu.memory_space<vmem>>, %arg3: memref<1536x128xbf16, #tpu.memory_space<vmem>>, %arg4: memref<8x128xf32, #tpu.memory_space<vmem>>) attributes {dimension_semantics = [#tpu.dimension_semantics<parallel>], iteration_bounds = array<i64: 1>, scalar_prefetch = 0 : i64, scratch_operands = 0 : i64, tpu.core_type = #tpu.core_type<tc>, window_params = [{transform_indices = @transform_0, window_bounds = array<i64: 8, 4>}, {transform_indices = @transform_1, window_bounds = array<i64: 8, 4>}, {pipeline_mode = #tpu.pipeline_mode<synchronous>, transform_indices = @transform_2, window_bounds = array<i64: 1536, 128>}, {transform_indices = @transform_3, window_bounds = array<i64: 8, 128>}]} {
    %c0 = arith.constant 0 : index
    %c0_0 = arith.constant 0 : index
    %0 = vector.load %arg1[%c0, %c0_0] : memref<8x4xi32, #tpu.memory_space<vmem>>, vector<8x4xi32>
    %c0_1 = arith.constant 0 : index
    %c0_2 = arith.constant 0 : index
    %1 = vector.load %arg2[%c0_1, %c0_2] : memref<8x4xi32, #tpu.memory_space<vmem>>, vector<8x4xi32>
    %c289_i32 = arith.constant 289 : i32
    %2 = vector.broadcast %c289_i32 : i32 to vector<8x4xi32>
    %3 = arith.addi %1, %2 : vector<8x4xi32>
    %4 = tpu.iota {dimensions = array<i32: 1>} : vector<8x384xi32>
    %5 = vector.extract_strided_slice %0 {offsets = [0, 0], sizes = [8, 1], strides = [1, 1]} : vector<8x4xi32> to vector<8x1xi32>
    %6 = vector.broadcast %5 : vector<8x1xi32> to vector<8x384xi32>
    %7 = arith.cmpi eq, %4, %6 : vector<8x384xi32>
    %8 = vector.extract_strided_slice %3 {offsets = [0, 0], sizes = [8, 1], strides = [1, 1]} : vector<8x4xi32> to vector<8x1xi32>
    %9 = vector.broadcast %8 : vector<8x1xi32> to vector<8x384xi32>
    %10 = arith.cmpi eq, %4, %9 : vector<8x384xi32>
    %11 = arith.ori %7, %10 : vector<8x384xi1>
    %12 = arith.extui %11 : vector<8x384xi1> to vector<8x384xi32>
    %13 = arith.sitofp %12 : vector<8x384xi32> to vector<8x384xf32>
    %14 = arith.truncf %13 : vector<8x384xf32> to vector<8x384xbf16>
    %c0_3 = arith.constant 0 : index
    %c0_4 = arith.constant 0 : index
    %15 = vector.load %arg3[%c0_3, %c0_4] : memref<1536x128xbf16, #tpu.memory_space<vmem>>, vector<384x128xbf16>
    %cst = arith.constant dense<0.000000e+00> : vector<8x128xf32>
    %16 = tpu.matmul %14, %15, %cst {dimension_numbers = #tpu.dot_dimension_numbers<[1], [0], [0], [1], [0, 0, 1, 1], [], []>} : vector<8x384xbf16>, vector<384x128xbf16>, vector<8x128xf32> -> vector<8x128xf32>
    %17 = vector.extract_strided_slice %0 {offsets = [0, 1], sizes = [8, 1], strides = [1, 1]} : vector<8x4xi32> to vector<8x1xi32>
    %18 = vector.broadcast %17 : vector<8x1xi32> to vector<8x384xi32>
    %19 = arith.cmpi eq, %4, %18 : vector<8x384xi32>
    %20 = vector.extract_strided_slice %3 {offsets = [0, 1], sizes = [8, 1], strides = [1, 1]} : vector<8x4xi32> to vector<8x1xi32>
    %21 = vector.broadcast %20 : vector<8x1xi32> to vector<8x384xi32>
    %22 = arith.cmpi eq, %4, %21 : vector<8x384xi32>
    %23 = arith.ori %19, %22 : vector<8x384xi1>
    %24 = arith.extui %23 : vector<8x384xi1> to vector<8x384xi32>
    %25 = arith.sitofp %24 : vector<8x384xi32> to vector<8x384xf32>
    %26 = arith.truncf %25 : vector<8x384xf32> to vector<8x384xbf16>
    %c384 = arith.constant 384 : index
    %c0_5 = arith.constant 0 : index
    %27 = vector.load %arg3[%c384, %c0_5] : memref<1536x128xbf16, #tpu.memory_space<vmem>>, vector<384x128xbf16>
    %cst_6 = arith.constant dense<0.000000e+00> : vector<8x128xf32>
    %28 = tpu.matmul %26, %27, %cst_6 {dimension_numbers = #tpu.dot_dimension_numbers<[1], [0], [0], [1], [0, 0, 1, 1], [], []>} : vector<8x384xbf16>, vector<384x128xbf16>, vector<8x128xf32> -> vector<8x128xf32>
    %29 = arith.addf %16, %28 : vector<8x128xf32>
    %30 = vector.extract_strided_slice %0 {offsets = [0, 2], sizes = [8, 1], strides = [1, 1]} : vector<8x4xi32> to vector<8x1xi32>
    %31 = vector.broadcast %30 : vector<8x1xi32> to vector<8x384xi32>
    %32 = arith.cmpi eq, %4, %31 : vector<8x384xi32>
    %33 = vector.extract_strided_slice %3 {offsets = [0, 2], sizes = [8, 1], strides = [1, 1]} : vector<8x4xi32> to vector<8x1xi32>
    %34 = vector.broadcast %33 : vector<8x1xi32> to vector<8x384xi32>
    %35 = arith.cmpi eq, %4, %34 : vector<8x384xi32>
    %36 = arith.ori %32, %35 : vector<8x384xi1>
    %37 = arith.extui %36 : vector<8x384xi1> to vector<8x384xi32>
    %38 = arith.sitofp %37 : vector<8x384xi32> to vector<8x384xf32>
    %39 = arith.truncf %38 : vector<8x384xf32> to vector<8x384xbf16>
    %c768 = arith.constant 768 : index
    %c0_7 = arith.constant 0 : index
    %40 = vector.load %arg3[%c768, %c0_7] : memref<1536x128xbf16, #tpu.memory_space<vmem>>, vector<384x128xbf16>
    %cst_8 = arith.constant dense<0.000000e+00> : vector<8x128xf32>
    %41 = tpu.matmul %39, %40, %cst_8 {dimension_numbers = #tpu.dot_dimension_numbers<[1], [0], [0], [1], [0, 0, 1, 1], [], []>} : vector<8x384xbf16>, vector<384x128xbf16>, vector<8x128xf32> -> vector<8x128xf32>
    %42 = arith.addf %29, %41 : vector<8x128xf32>
    %43 = vector.extract_strided_slice %0 {offsets = [0, 3], sizes = [8, 1], strides = [1, 1]} : vector<8x4xi32> to vector<8x1xi32>
    %44 = vector.broadcast %43 : vector<8x1xi32> to vector<8x384xi32>
    %45 = arith.cmpi eq, %4, %44 : vector<8x384xi32>
    %46 = vector.extract_strided_slice %3 {offsets = [0, 3], sizes = [8, 1], strides = [1, 1]} : vector<8x4xi32> to vector<8x1xi32>
    %47 = vector.broadcast %46 : vector<8x1xi32> to vector<8x384xi32>
    %48 = arith.cmpi eq, %4, %47 : vector<8x384xi32>
    %49 = arith.ori %45, %48 : vector<8x384xi1>
    %50 = arith.extui %49 : vector<8x384xi1> to vector<8x384xi32>
    %51 = arith.sitofp %50 : vector<8x384xi32> to vector<8x384xf32>
    %52 = arith.truncf %51 : vector<8x384xf32> to vector<8x384xbf16>
    %c1152 = arith.constant 1152 : index
    %c0_9 = arith.constant 0 : index
    %53 = vector.load %arg3[%c1152, %c0_9] : memref<1536x128xbf16, #tpu.memory_space<vmem>>, vector<384x128xbf16>
    %cst_10 = arith.constant dense<0.000000e+00> : vector<8x128xf32>
    %54 = tpu.matmul %52, %53, %cst_10 {dimension_numbers = #tpu.dot_dimension_numbers<[1], [0], [0], [1], [0, 0, 1, 1], [], []>} : vector<8x384xbf16>, vector<384x128xbf16>, vector<8x128xf32> -> vector<8x128xf32>
    %55 = arith.addf %42, %54 : vector<8x128xf32>
    %c0_11 = arith.constant 0 : index
    %c0_12 = arith.constant 0 : index
    %56 = vector.load %arg4[%c0_11, %c0_12] : memref<8x128xf32, #tpu.memory_space<vmem>>, vector<8x128xf32>
    tpu.vector_store %arg4[%c0_11, %c0_12], %55 {strides = array<i32>} : memref<8x128xf32, #tpu.memory_space<vmem>>, vector<8x128xf32>,
    return
  }
  func.func @transform_0(%arg0: i32) -> (i32, i32) {
    %c0_i32 = arith.constant 0 : i32
    %c0_i32_0 = arith.constant 0 : i32
    return %arg0, %c0_i32 : i32, i32
  }
  func.func @transform_1(%arg0: i32) -> (i32, i32) {
    %c0_i32 = arith.constant 0 : i32
    %c0_i32_0 = arith.constant 0 : i32
    return %arg0, %c0_i32 : i32, i32
  }
  func.func @transform_2(%arg0: i32) -> (i32, i32) {
    %c0_i32 = arith.constant 0 : i32
    %c0_i32_0 = arith.constant 0 : i32
    %c0_i32_1 = arith.constant 0 : i32
    return %c0_i32, %c0_i32_0 : i32, i32
  }
  func.func @transform_3(%arg0: i32) -> (i32, i32) {
    %c0_i32 = arith.constant 0 : i32
    %c0_i32_0 = arith.constant 0 : i32
    return %arg0, %c0_i32 : i32, i32
  }
}

</mosaic_0001>

<llo_original>
// kernel: tpu_custom_call.1
$region0: #{tpu_custom_call.1}
  #allocation0 [shape = 'u32[]', space=smem, size = 0x4, offset = 0x4, fixed_abs, tag = 'smem constant byte address 0x4 - core index']
  #allocation1 [shape = 'u32[72,128]{1,0:T(1,128)}', space=vmem, size = 0x9000, scoped, tag = 'internal scratch']
  %s0 = inlined_call_operand.vmem [shape: s32[8,4], index: 0, kind: input, shape index: {}]
  %s1 = inlined_call_operand.vmem [shape: s32[8,4], index: 1, kind: input, shape index: {}]
  %s2 = inlined_call_operand.hbm [shape: bf16[1536,128], index: 2, kind: input, shape index: {}]
  %s3 = inlined_call_operand.hbm [shape: f32[8,128], index: 3, kind: output, shape index: {}]
  %s4 = sld [smem:[#allocation0]]
  $region26: #{tpu_custom_call.1} parent=0
    _
  %s6 = ssub.s32 1, %s4
  %s7 = scalar_select 0, %s6, %s4
  $region1: #{tpu_custom_call.1} parent=0
    #allocation2 [shape = 'u8[393216]{0}', space=vmem, size = 0x60000, scoped, tag = 'input window, operand 2, single buffered']
    #allocation3 [shape = 's32[1]{0}', space=sflag, size = 0x4, scoped, tag = 'scoped memory for tpu_custom_call.1']
    #allocation4 [shape = 's32[1]{0}', space=sflag, size = 0x4, scoped, tag = 'scoped memory for tpu_custom_call.1']
    #allocation5 [shape = 'u8[4096]{0}', space=vmem, size = 0x1000, scoped, tag = 'output window, operand 0, single buffered']
    %8 = vsyncpa [#allocation3], 0
    %9 = vsyncpa [#allocation4], 0
    // Predicated region
    $region2: #{tpu_custom_call.1} parent=1 // pred_check
      _
    $region3: #{tpu_custom_call.1} parent=1 // pred_check_branch
      %11 = sbr.rel (0) target = $region5
    $region4: #{tpu_custom_call.1} parent=1 // pred_region
      _
    $region5: #{tpu_custom_call.1} parent=1 // pred_fallthru
      _
    // Predicated region
    $region6: #{tpu_custom_call.1} parent=1 // pred_check
      _
    $region7: #{tpu_custom_call.1} parent=1 // pred_check_branch
      %13 = sbr.rel (0) target = $region9
    $region8: #{tpu_custom_call.1} parent=1 // pred_region
      _
    $region9: #{tpu_custom_call.1} parent=1 // pred_fallthru
      _
    // Predicated region
    $region10: #{tpu_custom_call.1} parent=1 // pred_check
      _
    $region11: #{tpu_custom_call.1} parent=1 // pred_check_branch
      %15 = sbr.rel (0) target = $region13
    $region12: #{tpu_custom_call.1} parent=1 // pred_region
      %17 = vsyncadd [#allocation3], 0
      %s18 = sshll.u32 %s2, 4
      %s19 = int_to_ptr.hbm [resolvable:$true] %s18
      %s20 = sshll.u32 [#allocation2], 4
      %s21 = int_to_ptr.vmem [resolvable:$true] %s20
      %26 = dma.hbm_to_vmem [thread:$0]  %s19, 12288, %s21, [#allocation3], 64, 64, 4
    $region13: #{tpu_custom_call.1} parent=1 // pred_fallthru
      _
    // Predicated region
    $region14: #{tpu_custom_call.1} parent=1 // pred_check
      _
    $region15: #{tpu_custom_call.1} parent=1 // pred_check_branch
      %28 = sbr.rel (0) target = $region17
    $region16: #{tpu_custom_call.1} parent=1 // pred_region
      %30 = dma.done [#allocation3], 12288
    $region17: #{tpu_custom_call.1} parent=1 // pred_fallthru
      _
    %v31 = vld [vmem:[%s0] sm:$0xff]
    %v32 = vld [vmem:[%s1] sm:$0xff]
    %v33 = vadd.s32 %v32, 289
    %v34 = vlaneseq
    %v35 = vand.u32 %v34, 127
    %v36 = vadd.s32 %v35, 128
    %v37 = vadd.s32 %v35, 256
    %38 = vset.pattern.permute.xlu0 0
    %39 = vperm.xlu0 %38, %v31
    %v40 = vpop.permute.xlu0 %39
    %vm41 = vcmp.eq.s32.totalorder %v35, %v40
    %vm42 = vcmp.eq.s32.totalorder %v36, %v40
    %vm43 = vcmp.eq.s32.totalorder %v37, %v40
    %44 = vset.pattern.permute.xlu0 0
    %45 = vperm.xlu0 %44, %v33
    %v46 = vpop.permute.xlu0 %45
    %vm47 = vcmp.eq.s32.totalorder %v35, %v46
    %vm48 = vcmp.eq.s32.totalorder %v36, %v46
    %vm49 = vcmp.eq.s32.totalorder %v37, %v46
    %vm50 = vmor %vm41, %vm47
    %vm51 = vmor %vm42, %vm48
    %vm52 = vmor %vm43, %vm49
    %v53 = vsel %vm50, 1, 0
    %v54 = vsel %vm51, 1, 0
    %v55 = vsel %vm52, 1, 0
    %v56 = vcvt.s32.f32 %v53
    %v57 = vcvt.s32.f32 %v54
    %v58 = vcvt.s32.f32 %v55
    %v59 = vpack.c.bf16 %v56, %v56
    %v60 = vpack.c.bf16 %v57, %v57
    %v61 = vpack.c.bf16 %v58, %v58
    %v62 = vld [vmem:[#allocation2] sm:$0xf]
    %v63 = vld [vmem:[#allocation2 + $0x4] sm:$0xf]
    %v64 = vld [vmem:[#allocation2 + $0x8] sm:$0xf]
    %v65 = vld [vmem:[#allocation2 + $0xc] sm:$0xf]
    %v66 = vld [vmem:[#allocation2 + $0x10] sm:$0xf]
    %v67 = vld [vmem:[#allocation2 + $0x14] sm:$0xf]
    %v68 = vld [vmem:[#allocation2 + $0x18] sm:$0xf]
    %v69 = vld [vmem:[#allocation2 + $0x1c] sm:$0xf]
    %v70 = vld [vmem:[#allocation2 + $0x20] sm:$0xf]
    %v71 = vld [vmem:[#allocation2 + $0x24] sm:$0xf]
    %v72 = vld [vmem:[#allocation2 + $0x28] sm:$0xf]
    %v73 = vld [vmem:[#allocation2 + $0x2c] sm:$0xf]
    %v74 = vld [vmem:[#allocation2 + $0x30] sm:$0xf]
    %v75 = vld [vmem:[#allocation2 + $0x34] sm:$0xf]
    %v76 = vld [vmem:[#allocation2 + $0x38] sm:$0xf]
    %v77 = vld [vmem:[#allocation2 + $0x3c] sm:$0xf]
    %v78 = vld [vmem:[#allocation2 + $0x40] sm:$0xf]
    %v79 = vld [vmem:[#allocation2 + $0x44] sm:$0xf]
    %v80 = vld [vmem:[#allocation2 + $0x48] sm:$0xf]
    %v81 = vld [vmem:[#allocation2 + $0x4c] sm:$0xf]
    %v82 = vld [vmem:[#allocation2 + $0x50] sm:$0xf]
    %v83 = vld [vmem:[#allocation2 + $0x54] sm:$0xf]
    %v84 = vld [vmem:[#allocation2 + $0x58] sm:$0xf]
    %v85 = vld [vmem:[#allocation2 + $0x5c] sm:$0xf]
    %v86 = vld [vmem:[#allocation2 + $0x60] sm:$0xf]
    %v87 = vld [vmem:[#allocation2 + $0x64] sm:$0xf]
    %v88 = vld [vmem:[#allocation2 + $0x68] sm:$0xf]
    %v89 = vld [vmem:[#allocation2 + $0x6c] sm:$0xf]
    %v90 = vld [vmem:[#allocation2 + $0x70] sm:$0xf]
    %v91 = vld [vmem:[#allocation2 + $0x74] sm:$0xf]
    %v92 = vld [vmem:[#allocation2 + $0x78] sm:$0xf]
    %v93 = vld [vmem:[#allocation2 + $0x7c] sm:$0xf]
    %v94 = vld [vmem:[#allocation2 + $0x80] sm:$0xf]
    %v95 = vld [vmem:[#allocation2 + $0x84] sm:$0xf]
    %v96 = vld [vmem:[#allocation2 + $0x88] sm:$0xf]
    %v97 = vld [vmem:[#allocation2 + $0x8c] sm:$0xf]
    %v98 = vld [vmem:[#allocation2 + $0x90] sm:$0xf]
    %v99 = vld [vmem:[#allocation2 + $0x94] sm:$0xf]
    %v100 = vld [vmem:[#allocation2 + $0x98] sm:$0xf]
    %v101 = vld [vmem:[#allocation2 + $0x9c] sm:$0xf]
    %v102 = vld [vmem:[#allocation2 + $0xa0] sm:$0xf]
    %v103 = vld [vmem:[#allocation2 + $0xa4] sm:$0xf]
    %v104 = vld [vmem:[#allocation2 + $0xa8] sm:$0xf]
    %v105 = vld [vmem:[#allocation2 + $0xac] sm:$0xf]
    %v106 = vld [vmem:[#allocation2 + $0xb0] sm:$0xf]
    %v107 = vld [vmem:[#allocation2 + $0xb4] sm:$0xf]
    %v108 = vld [vmem:[#allocation2 + $0xb8] sm:$0xf]
    %v109 = vld [vmem:[#allocation2 + $0xbc] sm:$0xf]
    %110 = vset.pattern.permute.xlu0 1
    %111 = vperm.xlu0 %110, %v31
    %v112 = vpop.permute.xlu0 %111
    %vm113 = vcmp.eq.s32.totalorder %v35, %v112
    %vm114 = vcmp.eq.s32.totalorder %v36, %v112
    %vm115 = vcmp.eq.s32.totalorder %v37, %v112
    %116 = vset.pattern.permute.xlu0 1
    %117 = vperm.xlu0 %116, %v33
    %v118 = vpop.permute.xlu0 %117
    %vm119 = vcmp.eq.s32.totalorder %v35, %v118
    %vm120 = vcmp.eq.s32.totalorder %v36, %v118
    %vm121 = vcmp.eq.s32.totalorder %v37, %v118
    %vm122 = vmor %vm113, %vm119
    %vm123 = vmor %vm114, %vm120
    %vm124 = vmor %vm115, %vm121
    %v125 = vsel %vm122, 1, 0
    %v126 = vsel %vm123, 1, 0
    %v127 = vsel %vm124, 1, 0
    %v128 = vcvt.s32.f32 %v125
    %v129 = vcvt.s32.f32 %v126
    %v130 = vcvt.s32.f32 %v127
    %v131 = vpack.c.bf16 %v128, %v128
    %v132 = vpack.c.bf16 %v129, %v129
    %v133 = vpack.c.bf16 %v130, %v130
    %v134 = vld [vmem:[#allocation2 + $0xc0] sm:$0xf]
    %v135 = vld [vmem:[#allocation2 + $0xc4] sm:$0xf]
    %v136 = vld [vmem:[#allocation2 + $0xc8] sm:$0xf]
    %v137 = vld [vmem:[#allocation2 + $0xcc] sm:$0xf]
    %v138 = vld [vmem:[#allocation2 + $0xd0] sm:$0xf]
    %v139 = vld [vmem:[#allocation2 + $0xd4] sm:$0xf]
    %v140 = vld [vmem:[#allocation2 + $0xd8] sm:$0xf]
    %v141 = vld [vmem:[#allocation2 + $0xdc] sm:$0xf]
    %v142 = vld [vmem:[#allocation2 + $0xe0] sm:$0xf]
    %v143 = vld [vmem:[#allocation2 + $0xe4] sm:$0xf]
    %v144 = vld [vmem:[#allocation2 + $0xe8] sm:$0xf]
    %v145 = vld [vmem:[#allocation2 + $0xec] sm:$0xf]
    %v146 = vld [vmem:[#allocation2 + $0xf0] sm:$0xf]
    %v147 = vld [vmem:[#allocation2 + $0xf4] sm:$0xf]
    %v148 = vld [vmem:[#allocation2 + $0xf8] sm:$0xf]
    %v149 = vld [vmem:[#allocation2 + $0xfc] sm:$0xf]
    %v150 = vld [vmem:[#allocation2 + $0x100] sm:$0xf]
    %v151 = vld [vmem:[#allocation2 + $0x104] sm:$0xf]
    %v152 = vld [vmem:[#allocation2 + $0x108] sm:$0xf]
    %v153 = vld [vmem:[#allocation2 + $0x10c] sm:$0xf]
    %v154 = vld [vmem:[#allocation2 + $0x110] sm:$0xf]
    %v155 = vld [vmem:[#allocation2 + $0x114] sm:$0xf]
    %v156 = vld [vmem:[#allocation2 + $0x118] sm:$0xf]
    %v157 = vld [vmem:[#allocation2 + $0x11c] sm:$0xf]
    %v158 = vld [vmem:[#allocation2 + $0x120] sm:$0xf]
    %v159 = vld [vmem:[#allocation2 + $0x124] sm:$0xf]
    %v160 = vld [vmem:[#allocation2 + $0x128] sm:$0xf]
    %v161 = vld [vmem:[#allocation2 + $0x12c] sm:$0xf]
    %v162 = vld [vmem:[#allocation2 + $0x130] sm:$0xf]
    %v163 = vld [vmem:[#allocation2 + $0x134] sm:$0xf]
    %v164 = vld [vmem:[#allocation2 + $0x138] sm:$0xf]
    %v165 = vld [vmem:[#allocation2 + $0x13c] sm:$0xf]
    %v166 = vld [vmem:[#allocation2 + $0x140] sm:$0xf]
    %v167 = vld [vmem:[#allocation2 + $0x144] sm:$0xf]
    %v168 = vld [vmem:[#allocation2 + $0x148] sm:$0xf]
    %v169 = vld [vmem:[#allocation2 + $0x14c] sm:$0xf]
    %v170 = vld [vmem:[#allocation2 + $0x150] sm:$0xf]
    %v171 = vld [vmem:[#allocation2 + $0x154] sm:$0xf]
    %v172 = vld [vmem:[#allocation2 + $0x158] sm:$0xf]
    %v173 = vld [vmem:[#allocation2 + $0x15c] sm:$0xf]
    %v174 = vld [vmem:[#allocation2 + $0x160] sm:$0xf]
    %v175 = vld [vmem:[#allocation2 + $0x164] sm:$0xf]
    %v176 = vld [vmem:[#allocation2 + $0x168] sm:$0xf]
    %v177 = vld [vmem:[#allocation2 + $0x16c] sm:$0xf]
    %v178 = vld [vmem:[#allocation2 + $0x170] sm:$0xf]
    %v179 = vld [vmem:[#allocation2 + $0x174] sm:$0xf]
    %v180 = vld [vmem:[#allocation2 + $0x178] sm:$0xf]
    %v181 = vld [vmem:[#allocation2 + $0x17c] sm:$0xf]
    %v230 = vunpack.c.l.b16 %v134
    %v231 = vunpack.c.l.b16 %v135
    %v232 = vunpack.c.l.b16 %v136
    %v233 = vunpack.c.l.b16 %v137
    %v234 = vunpack.c.l.b16 %v138
    %v235 = vunpack.c.l.b16 %v139
    %v236 = vunpack.c.l.b16 %v140
    %v237 = vunpack.c.l.b16 %v141
    %v238 = vunpack.c.l.b16 %v142
    %v239 = vunpack.c.l.b16 %v143
    %v240 = vunpack.c.l.b16 %v144
    %v241 = vunpack.c.l.b16 %v145
    %v242 = vunpack.c.l.b16 %v146
    %v243 = vunpack.c.l.b16 %v147
    %v244 = vunpack.c.l.b16 %v148
    %v245 = vunpack.c.l.b16 %v149
    %v246 = vunpack.c.l.b16 %v150
    %v247 = vunpack.c.l.b16 %v151
    %v248 = vunpack.c.l.b16 %v152
    %v249 = vunpack.c.l.b16 %v153
    %v250 = vunpack.c.l.b16 %v154
    %v251 = vunpack.c.l.b16 %v155
    %v252 = vunpack.c.l.b16 %v156
    %v253 = vunpack.c.l.b16 %v157
    %v254 = vunpack.c.l.b16 %v158
    %v255 = vunpack.c.l.b16 %v159
    %v256 = vunpack.c.l.b16 %v160
    %v257 = vunpack.c.l.b16 %v161
    %v258 = vunpack.c.l.b16 %v162
    %v259 = vunpack.c.l.b16 %v163
    %v260 = vunpack.c.l.b16 %v164
    %v261 = vunpack.c.l.b16 %v165
    %v262 = vunpack.c.l.b16 %v166
    %v263 = vunpack.c.l.b16 %v167
    %v264 = vunpack.c.l.b16 %v168
    %v265 = vunpack.c.l.b16 %v169
    %v266 = vunpack.c.l.b16 %v170
    %v267 = vunpack.c.l.b16 %v171
    %v268 = vunpack.c.l.b16 %v172
    %v269 = vunpack.c.l.b16 %v173
    %v270 = vunpack.c.l.b16 %v174
    %v271 = vunpack.c.l.b16 %v175
    %v272 = vunpack.c.l.b16 %v176
    %v273 = vunpack.c.l.b16 %v177
    %v274 = vunpack.c.l.b16 %v178
    %v275 = vunpack.c.l.b16 %v179
    %v276 = vunpack.c.l.b16 %v180
    %v277 = vunpack.c.l.b16 %v181
    %v278 = vpack.c.b16 %v231, %v230
    %v279 = vpack.c.b16 %v233, %v232
    %v280 = vpack.c.b16 %v235, %v234
    %v281 = vpack.c.b16 %v237, %v236
    %v282 = vpack.c.b16 %v239, %v238
    %v283 = vpack.c.b16 %v241, %v240
    %v284 = vpack.c.b16 %v243, %v242
    %v285 = vpack.c.b16 %v245, %v244
    %v286 = vpack.c.b16 %v247, %v246
    %v287 = vpack.c.b16 %v249, %v248
    %v288 = vpack.c.b16 %v251, %v250
    %v289 = vpack.c.b16 %v253, %v252
    %v290 = vpack.c.b16 %v255, %v254
    %v291 = vpack.c.b16 %v257, %v256
    %v292 = vpack.c.b16 %v259, %v258
    %v293 = vpack.c.b16 %v261, %v260
    %v294 = vpack.c.b16 %v263, %v262
    %v295 = vpack.c.b16 %v265, %v264
    %v296 = vpack.c.b16 %v267, %v266
    %v297 = vpack.c.b16 %v269, %v268
    %v298 = vpack.c.b16 %v271, %v270
    %v299 = vpack.c.b16 %v273, %v272
    %v300 = vpack.c.b16 %v275, %v274
    %v301 = vpack.c.b16 %v277, %v276
    %326 = vmatpush.bf16.msra.mxu0 %v285
    %327 = vmatpush.bf16.msra.mxu0 %v284
    %328 = vmatpush.bf16.msra.mxu0 %v283
    %329 = vmatpush.bf16.msra.mxu0 %v282
    %330 = vmatpush.bf16.msra.mxu0 %v281
    %331 = vmatpush.bf16.msra.mxu0 %v280
    %332 = vmatpush.bf16.msra.mxu0 %v279
    %333 = vmatpush.bf16.msra.mxu0 %v278
    %334 = vmatmul.bf16.gmra.mxu0 %v131
    %v335 = vpop.f32.mrf.mxu0
    %v336 = vadd.f32 0.0, %v335
    %v337 = vpop.f32.mrf.mxu0
    %338 = vdwg.mxu0
    %339 = vmatpush.bf16.msra.mxu0 %v293
    %340 = vmatpush.bf16.msra.mxu0 %v292
    %341 = vmatpush.bf16.msra.mxu0 %v291
    %342 = vmatpush.bf16.msra.mxu0 %v290
    %343 = vmatpush.bf16.msra.mxu0 %v289
    %344 = vmatpush.bf16.msra.mxu0 %v288
    %345 = vmatpush.bf16.msra.mxu0 %v287
    %346 = vmatpush.bf16.msra.mxu0 %v286
    %347 = vmatmul.bf16.gmra.mxu0 %v132
    %v348 = vpop.f32.mrf.mxu0
    %v349 = vadd.f32 %v336, %v348
    %v350 = vpop.f32.mrf.mxu0
    %351 = vdwg.mxu0
    %352 = vmatpush.bf16.msra.mxu0 %v301
    %353 = vmatpush.bf16.msra.mxu0 %v300
    %354 = vmatpush.bf16.msra.mxu0 %v299
    %355 = vmatpush.bf16.msra.mxu0 %v298
    %356 = vmatpush.bf16.msra.mxu0 %v297
    %357 = vmatpush.bf16.msra.mxu0 %v296
    %358 = vmatpush.bf16.msra.mxu0 %v295
    %359 = vmatpush.bf16.msra.mxu0 %v294
    %360 = vmatmul.bf16.gmra.mxu0 %v133
    %v361 = vpop.f32.mrf.mxu0
    %v362 = vadd.f32 %v349, %v361
    %v363 = vpop.f32.mrf.mxu0
    %364 = vdwg.mxu0
    %v413 = vunpack.c.l.b16 %v62
    %v414 = vunpack.c.l.b16 %v63
    %v415 = vunpack.c.l.b16 %v64
    %v416 = vunpack.c.l.b16 %v65
    %v417 = vunpack.c.l.b16 %v66
    %v418 = vunpack.c.l.b16 %v67
    %v419 = vunpack.c.l.b16 %v68
    %v420 = vunpack.c.l.b16 %v69
    %v421 = vunpack.c.l.b16 %v70
    %v422 = vunpack.c.l.b16 %v71
    %v423 = vunpack.c.l.b16 %v72
    %v424 = vunpack.c.l.b16 %v73
    %v425 = vunpack.c.l.b16 %v74
    %v426 = vunpack.c.l.b16 %v75
    %v427 = vunpack.c.l.b16 %v76
    %v428 = vunpack.c.l.b16 %v77
    %v429 = vunpack.c.l.b16 %v78
    %v430 = vunpack.c.l.b16 %v79
    %v431 = vunpack.c.l.b16 %v80
    %v432 = vunpack.c.l.b16 %v81
    %v433 = vunpack.c.l.b16 %v82
    %v434 = vunpack.c.l.b16 %v83
    %v435 = vunpack.c.l.b16 %v84
    %v436 = vunpack.c.l.b16 %v85
    %v437 = vunpack.c.l.b16 %v86
    %v438 = vunpack.c.l.b16 %v87
    %v439 = vunpack.c.l.b16 %v88
    %v440 = vunpack.c.l.b16 %v89
    %v441 = vunpack.c.l.b16 %v90
    %v442 = vunpack.c.l.b16 %v91
    %v443 = vunpack.c.l.b16 %v92
    %v444 = vunpack.c.l.b16 %v93
    %v445 = vunpack.c.l.b16 %v94
    %v446 = vunpack.c.l.b16 %v95
    %v447 = vunpack.c.l.b16 %v96
    %v448 = vunpack.c.l.b16 %v97
    %v449 = vunpack.c.l.b16 %v98
    %v450 = vunpack.c.l.b16 %v99
    %v451 = vunpack.c.l.b16 %v100
    %v452 = vunpack.c.l.b16 %v101
    %v453 = vunpack.c.l.b16 %v102
    %v454 = vunpack.c.l.b16 %v103
    %v455 = vunpack.c.l.b16 %v104
    %v456 = vunpack.c.l.b16 %v105
    %v457 = vunpack.c.l.b16 %v106
    %v458 = vunpack.c.l.b16 %v107
    %v459 = vunpack.c.l.b16 %v108
    %v460 = vunpack.c.l.b16 %v109
    %v461 = vpack.c.b16 %v414, %v413
    %v462 = vpack.c.b16 %v416, %v415
    %v463 = vpack.c.b16 %v418, %v417
    %v464 = vpack.c.b16 %v420, %v419
    %v465 = vpack.c.b16 %v422, %v421
    %v466 = vpack.c.b16 %v424, %v423
    %v467 = vpack.c.b16 %v426, %v425
    %v468 = vpack.c.b16 %v428, %v427
    %v469 = vpack.c.b16 %v430, %v429
    %v470 = vpack.c.b16 %v432, %v431
    %v471 = vpack.c.b16 %v434, %v433
    %v472 = vpack.c.b16 %v436, %v435
    %v473 = vpack.c.b16 %v438, %v437
    %v474 = vpack.c.b16 %v440, %v439
    %v475 = vpack.c.b16 %v442, %v441
    %v476 = vpack.c.b16 %v444, %v443
    %v477 = vpack.c.b16 %v446, %v445
    %v478 = vpack.c.b16 %v448, %v447
    %v479 = vpack.c.b16 %v450, %v449
    %v480 = vpack.c.b16 %v452, %v451
    %v481 = vpack.c.b16 %v454, %v453
    %v482 = vpack.c.b16 %v456, %v455
    %v483 = vpack.c.b16 %v458, %v457
    %v484 = vpack.c.b16 %v460, %v459
    %509 = vmatpush.bf16.msra.mxu0 %v468
    %510 = vmatpush.bf16.msra.mxu0 %v467
    %511 = vmatpush.bf16.msra.mxu0 %v466
    %512 = vmatpush.bf16.msra.mxu0 %v465
    %513 = vmatpush.bf16.msra.mxu0 %v464
    %514 = vmatpush.bf16.msra.mxu0 %v463
    %515 = vmatpush.bf16.msra.mxu0 %v462
    %516 = vmatpush.bf16.msra.mxu0 %v461
    %517 = vmatmul.bf16.gmra.mxu0 %v59
    %v518 = vpop.f32.mrf.mxu0
    %v519 = vadd.f32 %v362, %v518
    %v520 = vpop.f32.mrf.mxu0
    %521 = vdwg.mxu0
    %522 = vmatpush.bf16.msra.mxu0 %v476
    %523 = vmatpush.bf16.msra.mxu0 %v475
    %524 = vmatpush.bf16.msra.mxu0 %v474
    %525 = vmatpush.bf16.msra.mxu0 %v473
    %526 = vmatpush.bf16.msra.mxu0 %v472
    %527 = vmatpush.bf16.msra.mxu0 %v471
    %528 = vmatpush.bf16.msra.mxu0 %v470
    %529 = vmatpush.bf16.msra.mxu0 %v469
    %530 = vmatmul.bf16.gmra.mxu0 %v60
    %v531 = vpop.f32.mrf.mxu0
    %v532 = vadd.f32 %v519, %v531
    %v533 = vpop.f32.mrf.mxu0
    %534 = vdwg.mxu0
    %535 = vmatpush.bf16.msra.mxu0 %v484
    %536 = vmatpush.bf16.msra.mxu0 %v483
    %537 = vmatpush.bf16.msra.mxu0 %v482
    %538 = vmatpush.bf16.msra.mxu0 %v481
    %539 = vmatpush.bf16.msra.mxu0 %v480
    %540 = vmatpush.bf16.msra.mxu0 %v479
    %541 = vmatpush.bf16.msra.mxu0 %v478
    %542 = vmatpush.bf16.msra.mxu0 %v477
    %543 = vmatmul.bf16.gmra.mxu0 %v61
    %v544 = vpop.f32.mrf.mxu0
    %v545 = vadd.f32 %v532, %v544
    %v546 = vpop.f32.mrf.mxu0
    %547 = vdwg.mxu0
    %548 = vset.pattern.permute.xlu0 2
    %549 = vperm.xlu0 %548, %v31
    %v550 = vpop.permute.xlu0 %549
    %vm551 = vcmp.eq.s32.totalorder %v35, %v550
    %vm552 = vcmp.eq.s32.totalorder %v36, %v550
    %vm553 = vcmp.eq.s32.totalorder %v37, %v550
    %554 = vset.pattern.permute.xlu0 2
    %555 = vperm.xlu0 %554, %v33
    %v556 = vpop.permute.xlu0 %555
    %vm557 = vcmp.eq.s32.totalorder %v35, %v556
    %vm558 = vcmp.eq.s32.totalorder %v36, %v556
    %vm559 = vcmp.eq.s32.totalorder %v37, %v556
    %vm560 = vmor %vm551, %vm557
    %vm561 = vmor %vm552, %vm558
    %vm562 = vmor %vm553, %vm559
    %v563 = vsel %vm560, 1, 0
    %v564 = vsel %vm561, 1, 0
    %v565 = vsel %vm562, 1, 0
    %v566 = vcvt.s32.f32 %v563
    %v567 = vcvt.s32.f32 %v564
    %v568 = vcvt.s32.f32 %v565
    %v569 = vpack.c.bf16 %v566, %v566
    %v570 = vpack.c.bf16 %v567, %v567
    %v571 = vpack.c.bf16 %v568, %v568
    %v572 = vld [vmem:[#allocation2 + $0x180] sm:$0xf]
    %v573 = vld [vmem:[#allocation2 + $0x184] sm:$0xf]
    %v574 = vld [vmem:[#allocation2 + $0x188] sm:$0xf]
    %v575 = vld [vmem:[#allocation2 + $0x18c] sm:$0xf]
    %v576 = vld [vmem:[#allocation2 + $0x190] sm:$0xf]
    %v577 = vld [vmem:[#allocation2 + $0x194] sm:$0xf]
    %v578 = vld [vmem:[#allocation2 + $0x198] sm:$0xf]
    %v579 = vld [vmem:[#allocation2 + $0x19c] sm:$0xf]
    %v580 = vld [vmem:[#allocation2 + $0x1a0] sm:$0xf]
    %v581 = vld [vmem:[#allocation2 + $0x1a4] sm:$0xf]
    %v582 = vld [vmem:[#allocation2 + $0x1a8] sm:$0xf]
    %v583 = vld [vmem:[#allocation2 + $0x1ac] sm:$0xf]
    %v584 = vld [vmem:[#allocation2 + $0x1b0] sm:$0xf]
    %v585 = vld [vmem:[#allocation2 + $0x1b4] sm:$0xf]
    %v586 = vld [vmem:[#allocation2 + $0x1b8] sm:$0xf]
    %v587 = vld [vmem:[#allocation2 + $0x1bc] sm:$0xf]
    %v588 = vld [vmem:[#allocation2 + $0x1c0] sm:$0xf]
    %v589 = vld [vmem:[#allocation2 + $0x1c4] sm:$0xf]
    %v590 = vld [vmem:[#allocation2 + $0x1c8] sm:$0xf]
    %v591 = vld [vmem:[#allocation2 + $0x1cc] sm:$0xf]
    %v592 = vld [vmem:[#allocation2 + $0x1d0] sm:$0xf]
    %v593 = vld [vmem:[#allocation2 + $0x1d4] sm:$0xf]
    %v594 = vld [vmem:[#allocation2 + $0x1d8] sm:$0xf]
    %v595 = vld [vmem:[#allocation2 + $0x1dc] sm:$0xf]
    %v596 = vld [vmem:[#allocation2 + $0x1e0] sm:$0xf]
    %v597 = vld [vmem:[#allocation2 + $0x1e4] sm:$0xf]
    %v598 = vld [vmem:[#allocation2 + $0x1e8] sm:$0xf]
    %v599 = vld [vmem:[#allocation2 + $0x1ec] sm:$0xf]
    %v600 = vld [vmem:[#allocation2 + $0x1f0] sm:$0xf]
    %v601 = vld [vmem:[#allocation2 + $0x1f4] sm:$0xf]
    %v602 = vld [vmem:[#allocation2 + $0x1f8] sm:$0xf]
    %v603 = vld [vmem:[#allocation2 + $0x1fc] sm:$0xf]
    %v604 = vld [vmem:[#allocation2 + $0x200] sm:$0xf]
    %v605 = vld [vmem:[#allocation2 + $0x204] sm:$0xf]
    %v606 = vld [vmem:[#allocation2 + $0x208] sm:$0xf]
    %v607 = vld [vmem:[#allocation2 + $0x20c] sm:$0xf]
    %v608 = vld [vmem:[#allocation2 + $0x210] sm:$0xf]
    %v609 = vld [vmem:[#allocation2 + $0x214] sm:$0xf]
    %v610 = vld [vmem:[#allocation2 + $0x218] sm:$0xf]
    %v611 = vld [vmem:[#allocation2 + $0x21c] sm:$0xf]
    %v612 = vld [vmem:[#allocation2 + $0x220] sm:$0xf]
    %v613 = vld [vmem:[#allocation2 + $0x224] sm:$0xf]
    %v614 = vld [vmem:[#allocation2 + $0x228] sm:$0xf]
    %v615 = vld [vmem:[#allocation2 + $0x22c] sm:$0xf]
    %v616 = vld [vmem:[#allocation2 + $0x230] sm:$0xf]
    %v617 = vld [vmem:[#allocation2 + $0x234] sm:$0xf]
    %v618 = vld [vmem:[#allocation2 + $0x238] sm:$0xf]
    %v619 = vld [vmem:[#allocation2 + $0x23c] sm:$0xf]
    %v668 = vunpack.c.l.b16 %v572
    %v669 = vunpack.c.l.b16 %v573
    %v670 = vunpack.c.l.b16 %v574
    %v671 = vunpack.c.l.b16 %v575
    %v672 = vunpack.c.l.b16 %v576
    %v673 = vunpack.c.l.b16 %v577
    %v674 = vunpack.c.l.b16 %v578
    %v675 = vunpack.c.l.b16 %v579
    %v676 = vunpack.c.l.b16 %v580
    %v677 = vunpack.c.l.b16 %v581
    %v678 = vunpack.c.l.b16 %v582
    %v679 = vunpack.c.l.b16 %v583
    %v680 = vunpack.c.l.b16 %v584
    %v681 = vunpack.c.l.b16 %v585
    %v682 = vunpack.c.l.b16 %v586
    %v683 = vunpack.c.l.b16 %v587
    %v684 = vunpack.c.l.b16 %v588
    %v685 = vunpack.c.l.b16 %v589
    %v686 = vunpack.c.l.b16 %v590
    %v687 = vunpack.c.l.b16 %v591
    %v688 = vunpack.c.l.b16 %v592
    %v689 = vunpack.c.l.b16 %v593
    %v690 = vunpack.c.l.b16 %v594
    %v691 = vunpack.c.l.b16 %v595
    %v692 = vunpack.c.l.b16 %v596
    %v693 = vunpack.c.l.b16 %v597
    %v694 = vunpack.c.l.b16 %v598
    %v695 = vunpack.c.l.b16 %v599
    %v696 = vunpack.c.l.b16 %v600
    %v697 = vunpack.c.l.b16 %v601
    %v698 = vunpack.c.l.b16 %v602
    %v699 = vunpack.c.l.b16 %v603
    %v700 = vunpack.c.l.b16 %v604
    %v701 = vunpack.c.l.b16 %v605
    %v702 = vunpack.c.l.b16 %v606
    %v703 = vunpack.c.l.b16 %v607
    %v704 = vunpack.c.l.b16 %v608
    %v705 = vunpack.c.l.b16 %v609
    %v706 = vunpack.c.l.b16 %v610
    %v707 = vunpack.c.l.b16 %v611
    %v708 = vunpack.c.l.b16 %v612
    %v709 = vunpack.c.l.b16 %v613
    %v710 = vunpack.c.l.b16 %v614
    %v711 = vunpack.c.l.b16 %v615
    %v712 = vunpack.c.l.b16 %v616
    %v713 = vunpack.c.l.b16 %v617
    %v714 = vunpack.c.l.b16 %v618
    %v715 = vunpack.c.l.b16 %v619
    %v716 = vpack.c.b16 %v669, %v668
    %v717 = vpack.c.b16 %v671, %v670
    %v718 = vpack.c.b16 %v673, %v672
    %v719 = vpack.c.b16 %v675, %v674
    %v720 = vpack.c.b16 %v677, %v676
    %v721 = vpack.c.b16 %v679, %v678
    %v722 = vpack.c.b16 %v681, %v680
    %v723 = vpack.c.b16 %v683, %v682
    %v724 = vpack.c.b16 %v685, %v684
    %v725 = vpack.c.b16 %v687, %v686
    %v726 = vpack.c.b16 %v689, %v688
    %v727 = vpack.c.b16 %v691, %v690
    %v728 = vpack.c.b16 %v693, %v692
    %v729 = vpack.c.b16 %v695, %v694
    %v730 = vpack.c.b16 %v697, %v696
    %v731 = vpack.c.b16 %v699, %v698
    %v732 = vpack.c.b16 %v701, %v700
    %v733 = vpack.c.b16 %v703, %v702
    %v734 = vpack.c.b16 %v705, %v704
    %v735 = vpack.c.b16 %v707, %v706
    %v736 = vpack.c.b16 %v709, %v708
    %v737 = vpack.c.b16 %v711, %v710
    %v738 = vpack.c.b16 %v713, %v712
    %v739 = vpack.c.b16 %v715, %v714
    %764 = vmatpush.bf16.msra.mxu0 %v723
    %765 = vmatpush.bf16.msra.mxu0 %v722
    %766 = vmatpush.bf16.msra.mxu0 %v721
    %767 = vmatpush.bf16.msra.mxu0 %v720
    %768 = vmatpush.bf16.msra.mxu0 %v719
    %769 = vmatpush.bf16.msra.mxu0 %v718
    %770 = vmatpush.bf16.msra.mxu0 %v717
    %771 = vmatpush.bf16.msra.mxu0 %v716
    %772 = vmatmul.bf16.gmra.mxu0 %v569
    %v773 = vpop.f32.mrf.mxu0
    %v774 = vadd.f32 0.0, %v773
    %v775 = vpop.f32.mrf.mxu0
    %776 = vdwg.mxu0
    %777 = vmatpush.bf16.msra.mxu0 %v731
    %778 = vmatpush.bf16.msra.mxu0 %v730
    %779 = vmatpush.bf16.msra.mxu0 %v729
    %780 = vmatpush.bf16.msra.mxu0 %v728
    %781 = vmatpush.bf16.msra.mxu0 %v727
    %782 = vmatpush.bf16.msra.mxu0 %v726
    %783 = vmatpush.bf16.msra.mxu0 %v725
    %784 = vmatpush.bf16.msra.mxu0 %v724
    %785 = vmatmul.bf16.gmra.mxu0 %v570
    %v786 = vpop.f32.mrf.mxu0
    %v787 = vadd.f32 %v774, %v786
    %v788 = vpop.f32.mrf.mxu0
    %789 = vdwg.mxu0
    %790 = vmatpush.bf16.msra.mxu0 %v739
    %791 = vmatpush.bf16.msra.mxu0 %v738
    %792 = vmatpush.bf16.msra.mxu0 %v737
    %793 = vmatpush.bf16.msra.mxu0 %v736
    %794 = vmatpush.bf16.msra.mxu0 %v735
    %795 = vmatpush.bf16.msra.mxu0 %v734
    %796 = vmatpush.bf16.msra.mxu0 %v733
    %797 = vmatpush.bf16.msra.mxu0 %v732
    %798 = vmatmul.bf16.gmra.mxu0 %v571
    %v799 = vpop.f32.mrf.mxu0
    %v800 = vadd.f32 %v787, %v799
    %v801 = vpop.f32.mrf.mxu0
    %802 = vdwg.mxu0
    %v803 = vadd.f32 %v545, %v800
    %804 = vset.pattern.permute.xlu0 3
    %805 = vperm.xlu0 %804, %v31
    %v806 = vpop.permute.xlu0 %805
    %vm807 = vcmp.eq.s32.totalorder %v35, %v806
    %vm808 = vcmp.eq.s32.totalorder %v36, %v806
    %vm809 = vcmp.eq.s32.totalorder %v37, %v806
    %810 = vset.pattern.permute.xlu0 3
    %811 = vperm.xlu0 %810, %v33
    %v812 = vpop.permute.xlu0 %811
    %vm813 = vcmp.eq.s32.totalorder %v35, %v812
    %vm814 = vcmp.eq.s32.totalorder %v36, %v812
    %vm815 = vcmp.eq.s32.totalorder %v37, %v812
    %vm816 = vmor %vm807, %vm813
    %vm817 = vmor %vm808, %vm814
    %vm818 = vmor %vm809, %vm815
    %v819 = vsel %vm816, 1, 0
    %v820 = vsel %vm817, 1, 0
    %v821 = vsel %vm818, 1, 0
    %v822 = vcvt.s32.f32 %v819
    %v823 = vcvt.s32.f32 %v820
    %v824 = vcvt.s32.f32 %v821
    %v825 = vpack.c.bf16 %v822, %v822
    %v826 = vpack.c.bf16 %v823, %v823
    %v827 = vpack.c.bf16 %v824, %v824
    %v828 = vld [vmem:[#allocation2 + $0x240] sm:$0xf]
    %v829 = vld [vmem:[#allocation2 + $0x244] sm:$0xf]
    %v830 = vld [vmem:[#allocation2 + $0x248] sm:$0xf]
    %v831 = vld [vmem:[#allocation2 + $0x24c] sm:$0xf]
    %v832 = vld [vmem:[#allocation2 + $0x250] sm:$0xf]
    %v833 = vld [vmem:[#allocation2 + $0x254] sm:$0xf]
    %v834 = vld [vmem:[#allocation2 + $0x258] sm:$0xf]
    %v835 = vld [vmem:[#allocation2 + $0x25c] sm:$0xf]
    %v836 = vld [vmem:[#allocation2 + $0x260] sm:$0xf]
    %v837 = vld [vmem:[#allocation2 + $0x264] sm:$0xf]
    %v838 = vld [vmem:[#allocation2 + $0x268] sm:$0xf]
    %v839 = vld [vmem:[#allocation2 + $0x26c] sm:$0xf]
    %v840 = vld [vmem:[#allocation2 + $0x270] sm:$0xf]
    %v841 = vld [vmem:[#allocation2 + $0x274] sm:$0xf]
    %v842 = vld [vmem:[#allocation2 + $0x278] sm:$0xf]
    %v843 = vld [vmem:[#allocation2 + $0x27c] sm:$0xf]
    %v844 = vld [vmem:[#allocation2 + $0x280] sm:$0xf]
    %v845 = vld [vmem:[#allocation2 + $0x284] sm:$0xf]
    %v846 = vld [vmem:[#allocation2 + $0x288] sm:$0xf]
    %v847 = vld [vmem:[#allocation2 + $0x28c] sm:$0xf]
    %v848 = vld [vmem:[#allocation2 + $0x290] sm:$0xf]
    %v849 = vld [vmem:[#allocation2 + $0x294] sm:$0xf]
    %v850 = vld [vmem:[#allocation2 + $0x298] sm:$0xf]
    %v851 = vld [vmem:[#allocation2 + $0x29c] sm:$0xf]
    %v852 = vld [vmem:[#allocation2 + $0x2a0] sm:$0xf]
    %v853 = vld [vmem:[#allocation2 + $0x2a4] sm:$0xf]
    %v854 = vld [vmem:[#allocation2 + $0x2a8] sm:$0xf]
    %v855 = vld [vmem:[#allocation2 + $0x2ac] sm:$0xf]
    %v856 = vld [vmem:[#allocation2 + $0x2b0] sm:$0xf]
    %v857 = vld [vmem:[#allocation2 + $0x2b4] sm:$0xf]
    %v858 = vld [vmem:[#allocation2 + $0x2b8] sm:$0xf]
    %v859 = vld [vmem:[#allocation2 + $0x2bc] sm:$0xf]
    %v860 = vld [vmem:[#allocation2 + $0x2c0] sm:$0xf]
    %v861 = vld [vmem:[#allocation2 + $0x2c4] sm:$0xf]
    %v862 = vld [vmem:[#allocation2 + $0x2c8] sm:$0xf]
    %v863 = vld [vmem:[#allocation2 + $0x2cc] sm:$0xf]
    %v864 = vld [vmem:[#allocation2 + $0x2d0] sm:$0xf]
    %v865 = vld [vmem:[#allocation2 + $0x2d4] sm:$0xf]
    %v866 = vld [vmem:[#allocation2 + $0x2d8] sm:$0xf]
    %v867 = vld [vmem:[#allocation2 + $0x2dc] sm:$0xf]
    %v868 = vld [vmem:[#allocation2 + $0x2e0] sm:$0xf]
    %v869 = vld [vmem:[#allocation2 + $0x2e4] sm:$0xf]
    %v870 = vld [vmem:[#allocation2 + $0x2e8] sm:$0xf]
    %v871 = vld [vmem:[#allocation2 + $0x2ec] sm:$0xf]
    %v872 = vld [vmem:[#allocation2 + $0x2f0] sm:$0xf]
    %v873 = vld [vmem:[#allocation2 + $0x2f4] sm:$0xf]
    %v874 = vld [vmem:[#allocation2 + $0x2f8] sm:$0xf]
    %v875 = vld [vmem:[#allocation2 + $0x2fc] sm:$0xf]
    %v924 = vunpack.c.l.b16 %v828
    %v925 = vunpack.c.l.b16 %v829
    %v926 = vunpack.c.l.b16 %v830
    %v927 = vunpack.c.l.b16 %v831
    %v928 = vunpack.c.l.b16 %v832
    %v929 = vunpack.c.l.b16 %v833
    %v930 = vunpack.c.l.b16 %v834
    %v931 = vunpack.c.l.b16 %v835
    %v932 = vunpack.c.l.b16 %v836
    %v933 = vunpack.c.l.b16 %v837
    %v934 = vunpack.c.l.b16 %v838
    %v935 = vunpack.c.l.b16 %v839
    %v936 = vunpack.c.l.b16 %v840
    %v937 = vunpack.c.l.b16 %v841
    %v938 = vunpack.c.l.b16 %v842
    %v939 = vunpack.c.l.b16 %v843
    %v940 = vunpack.c.l.b16 %v844
    %v941 = vunpack.c.l.b16 %v845
    %v942 = vunpack.c.l.b16 %v846
    %v943 = vunpack.c.l.b16 %v847
    %v944 = vunpack.c.l.b16 %v848
    %v945 = vunpack.c.l.b16 %v849
    %v946 = vunpack.c.l.b16 %v850
    %v947 = vunpack.c.l.b16 %v851
    %v948 = vunpack.c.l.b16 %v852
    %v949 = vunpack.c.l.b16 %v853
    %v950 = vunpack.c.l.b16 %v854
    %v951 = vunpack.c.l.b16 %v855
    %v952 = vunpack.c.l.b16 %v856
    %v953 = vunpack.c.l.b16 %v857
    %v954 = vunpack.c.l.b16 %v858
    %v955 = vunpack.c.l.b16 %v859
    %v956 = vunpack.c.l.b16 %v860
    %v957 = vunpack.c.l.b16 %v861
    %v958 = vunpack.c.l.b16 %v862
    %v959 = vunpack.c.l.b16 %v863
    %v960 = vunpack.c.l.b16 %v864
    %v961 = vunpack.c.l.b16 %v865
    %v962 = vunpack.c.l.b16 %v866
    %v963 = vunpack.c.l.b16 %v867
    %v964 = vunpack.c.l.b16 %v868
    %v965 = vunpack.c.l.b16 %v869
    %v966 = vunpack.c.l.b16 %v870
    %v967 = vunpack.c.l.b16 %v871
    %v968 = vunpack.c.l.b16 %v872
    %v969 = vunpack.c.l.b16 %v873
    %v970 = vunpack.c.l.b16 %v874
    %v971 = vunpack.c.l.b16 %v875
    %v972 = vpack.c.b16 %v925, %v924
    %v973 = vpack.c.b16 %v927, %v926
    %v974 = vpack.c.b16 %v929, %v928
    %v975 = vpack.c.b16 %v931, %v930
    %v976 = vpack.c.b16 %v933, %v932
    %v977 = vpack.c.b16 %v935, %v934
    %v978 = vpack.c.b16 %v937, %v936
    %v979 = vpack.c.b16 %v939, %v938
    %v980 = vpack.c.b16 %v941, %v940
    %v981 = vpack.c.b16 %v943, %v942
    %v982 = vpack.c.b16 %v945, %v944
    %v983 = vpack.c.b16 %v947, %v946
    %v984 = vpack.c.b16 %v949, %v948
    %v985 = vpack.c.b16 %v951, %v950
    %v986 = vpack.c.b16 %v953, %v952
    %v987 = vpack.c.b16 %v955, %v954
    %v988 = vpack.c.b16 %v957, %v956
    %v989 = vpack.c.b16 %v959, %v958
    %v990 = vpack.c.b16 %v961, %v960
    %v991 = vpack.c.b16 %v963, %v962
    %v992 = vpack.c.b16 %v965, %v964
    %v993 = vpack.c.b16 %v967, %v966
    %v994 = vpack.c.b16 %v969, %v968
    %v995 = vpack.c.b16 %v971, %v970
    %1020 = vmatpush.bf16.msra.mxu0 %v979
    %1021 = vmatpush.bf16.msra.mxu0 %v978
    %1022 = vmatpush.bf16.msra.mxu0 %v977
    %1023 = vmatpush.bf16.msra.mxu0 %v976
    %1024 = vmatpush.bf16.msra.mxu0 %v975
    %1025 = vmatpush.bf16.msra.mxu0 %v974
    %1026 = vmatpush.bf16.msra.mxu0 %v973
    %1027 = vmatpush.bf16.msra.mxu0 %v972
    %1028 = vmatmul.bf16.gmra.mxu0 %v825
    %v1029 = vpop.f32.mrf.mxu0
    %v1030 = vadd.f32 0.0, %v1029
    %v1031 = vpop.f32.mrf.mxu0
    %1032 = vdwg.mxu0
    %1033 = vmatpush.bf16.msra.mxu0 %v987
    %1034 = vmatpush.bf16.msra.mxu0 %v986
    %1035 = vmatpush.bf16.msra.mxu0 %v985
    %1036 = vmatpush.bf16.msra.mxu0 %v984
    %1037 = vmatpush.bf16.msra.mxu0 %v983
    %1038 = vmatpush.bf16.msra.mxu0 %v982
    %1039 = vmatpush.bf16.msra.mxu0 %v981
    %1040 = vmatpush.bf16.msra.mxu0 %v980
    %1041 = vmatmul.bf16.gmra.mxu0 %v826
    %v1042 = vpop.f32.mrf.mxu0
    %v1043 = vadd.f32 %v1030, %v1042
    %v1044 = vpop.f32.mrf.mxu0
    %1045 = vdwg.mxu0
    %1046 = vmatpush.bf16.msra.mxu0 %v995
    %1047 = vmatpush.bf16.msra.mxu0 %v994
    %1048 = vmatpush.bf16.msra.mxu0 %v993
    %1049 = vmatpush.bf16.msra.mxu0 %v992
    %1050 = vmatpush.bf16.msra.mxu0 %v991
    %1051 = vmatpush.bf16.msra.mxu0 %v990
    %1052 = vmatpush.bf16.msra.mxu0 %v989
    %1053 = vmatpush.bf16.msra.mxu0 %v988
    %1054 = vmatmul.bf16.gmra.mxu0 %v827
    %v1055 = vpop.f32.mrf.mxu0
    %v1056 = vadd.f32 %v1043, %v1055
    %v1057 = vpop.f32.mrf.mxu0
    %1058 = vdwg.mxu0
    %v1059 = vadd.f32 %v803, %v1056
    %1060 = vst [vmem:[#allocation5] sm:$0xff] %v1059
    // Predicated region
    $region18: #{tpu_custom_call.1} parent=1 // pred_check
      _
    $region19: #{tpu_custom_call.1} parent=1 // pred_check_branch
      %1062 = sbr.rel (0) target = $region21
    $region20: #{tpu_custom_call.1} parent=1 // pred_region
      %1064 = vsyncadd [#allocation4], 0
      %s1066 = sshll.u32 [#allocation5], 4
      %s1067 = int_to_ptr.vmem [resolvable:$true] %s1066
      %s1068 = sshll.u32 %s3, 4
      %s1069 = int_to_ptr.hbm [resolvable:$true] %s1068
      %1071 = dma.vmem_to_hbm [thread:$0]  %s1067, 128, %s1069, [#allocation4]
    $region21: #{tpu_custom_call.1} parent=1 // pred_fallthru
      _
    // Predicated region
    $region22: #{tpu_custom_call.1} parent=1 // pred_check
      _
    $region23: #{tpu_custom_call.1} parent=1 // pred_check_branch
      %1073 = sbr.rel (0) target = $region25
    $region24: #{tpu_custom_call.1} parent=1 // pred_region
      %1075 = dma.done [#allocation4], 128
    $region25: #{tpu_custom_call.1} parent=1 // pred_fallthru
      _
    %1076 = vsyncpa [#allocation3], 1
    %1077 = vsyncpa [#allocation4], 1

</llo_original>
